<compile_context>
chip_gen: v5e
topology: v5e:2x2
jax: 0.10.0
libtpu: 0.0.40
codegen_flags: <defaults>
</compile_context>

<pallas_src>
import functools
import math

import jax
import jax.numpy as jnp
from jax.experimental import pallas as pl
from jax.experimental.pallas import tpu as pltpu


def _sa_shortener_kernel(q_heads_ref, query_ref, x_ref, wkv_ref, bkv_ref, wo_ref, bo_ref,
                         out_ref, attn_ref, ctx_scratch, *, num_heads):
    """Processes a (Bb, S, E) slab of the batch per grid step."""
    Bb, S, E = x_ref.shape
    H = num_heads
    hd = E // H
    T = query_ref.shape[1]

    x = x_ref[...]                          # (Bb, S, E), caller dtype (bf16 stays bf16)
    cdt = x.dtype                           # MXU operand dtype

    # ---- fused K/V projection: one (Bb*S, E) @ (E, 2E) matmul, f32 accumulate ----------
    xf = x.reshape(Bb * S, E)
    kv = jnp.dot(xf, wkv_ref[...], preferred_element_type=jnp.float32) + bkv_ref[...]
    kv = kv.astype(cdt)
    k = kv[:, :E].reshape(Bb, S, E)
    v = kv[:, E:].reshape(Bb, S, E)

    q_heads = q_heads_ref[...]              # (H, T, hd), already projected + scaled by 1/sqrt(hd)

    # ---- per-head attention, batched over Bb (contiguous lane slices, no transposes) ----
    attn_parts = []
    for h in range(H):                      # H is small -> static unroll
        lo = h * hd
        qh = jnp.broadcast_to(q_heads[h], (Bb, T, hd))               # (Bb, T, hd)
        kh = k[:, :, lo:lo + hd]                                     # (Bb, S, hd)
        vh = v[:, :, lo:lo + hd]                                     # (Bb, S, hd)

        s = jnp.einsum('btd,bsd->bts', qh, kh,
                       preferred_element_type=jnp.float32)           # (Bb, T, S)
        m = jnp.max(s, axis=-1, keepdims=True)
        p = jnp.exp(s - m)
        l = jnp.sum(p, axis=-1, keepdims=True)
        a = p * pl.reciprocal(l, approx=True)                        # softmax (EUP divide)
        attn_parts.append(a)

        ctx_h = jnp.einsum('bts,bsd->btd', a.astype(cdt), vh,
                           preferred_element_type=jnp.float32)       # (Bb, T, hd)
        ctx_scratch[:, :, lo:lo + hd] = ctx_h                        # lane-slice write, no concat

    # single dense store of the per-step attention block
    attn_ref[...] = jnp.stack(attn_parts, axis=1).astype(attn_ref.dtype)   # (Bb, H, T, S)

    # ---- output projection + residual add of the (un-repeated) learned query ------------
    ctx = ctx_scratch[...].reshape(Bb * T, E).astype(cdt)
    out = jnp.dot(ctx, wo_ref[...], preferred_element_type=jnp.float32) + bo_ref[...]
    out = out.reshape(Bb, T, E) + query_ref[...]                     # (1, T, E) broadcasts over Bb
    out_ref[...] = out.astype(out_ref.dtype)


def _choose_block_batch(B, S, E, H, T, act_bytes, attn_bytes, budget_bytes=8 << 20):
    """Largest divisor of B whose double-buffered blocks + f32 temps fit the budget.
    Capped at B//2 so the batch-parallel grid keeps both v7x TensorCores busy."""
    per_b = (2 * ((S * E + T * E) * act_bytes + H * T * S * attn_bytes)   # pipelined in/out blocks
             + (2 * S * E + 2 * H * T * S + 2 * T * E) * 4)               # f32 temps + scratch
    bb = max(1, min(B, budget_bytes // max(per_b, 1)))
    if B >= 2:
        bb = min(bb, B // 2)
    while bb > 1 and B % bb:
        bb -= 1
    return bb


def sa_sequence_shortener(x, query, wq, bq, wk, bk, wv, bv, wo, bo, *, num_heads,
                          key_padding_mask=None, attn_dtype=jnp.float32):
    """Returns (attn_output + query, (attn_weights,)) matching the PyTorch module."""
    # TODO(synk): key_padding_mask path not implemented.
    assert key_padding_mask is None
    B, S, E = x.shape
    T = query.shape[1]
    H = num_heads
    assert E % H == 0
    hd = E // H

    # ---- batch-invariant preprocessing (plain XLA, done once, not once per grid step) ----
    f32 = jnp.float32
    q_proj = (jnp.dot(query[0].astype(f32), wq.astype(f32)) + bq.astype(f32)) / math.sqrt(hd)
    q_heads = jnp.transpose(q_proj.reshape(T, H, hd), (1, 0, 2)).astype(x.dtype)   # (H, T, hd)
    wkv = jnp.concatenate([wk, wv], axis=1)                                        # (E, 2E)
    bkv = jnp.concatenate([bk, bv], axis=1)                                        # (1, 2E)

    act_bytes = jnp.dtype(x.dtype).itemsize
    attn_bytes = jnp.dtype(attn_dtype).itemsize
    Bb = _choose_block_batch(B, S, E, H, T, act_bytes, attn_bytes)
    grid = (B // Bb,)

    # VMEM limit derived from the actual block sizes (~50% headroom), clamped for v7x's 64 MiB.
    w_bytes = jnp.dtype(wo.dtype).itemsize
    block_bytes = 2 * Bb * ((S * E + T * E) * act_bytes + H * T * S * attn_bytes)
    weight_bytes = 2 * ((3 * E * E + 3 * E) * w_bytes + 2 * T * E * act_bytes)
    temp_bytes = Bb * (2 * S * E + 2 * H * T * S + 2 * T * E) * 4
    vmem_limit = int(1.5 * (block_bytes + weight_bytes + temp_bytes))
    vmem_limit = max(32 << 20, min(vmem_limit, 64 << 20))

    out, attn = pl.pallas_call(
        functools.partial(_sa_shortener_kernel, num_heads=H),
        grid=grid,
        out_shape=(
            jax.ShapeDtypeStruct((B, T, E), x.dtype),          # shortened sequence
            jax.ShapeDtypeStruct((B, H, T, S), attn_dtype),    # per-head attention weights
        ),
        in_specs=[
            pl.BlockSpec((H, T, hd), lambda b: (0, 0, 0)),     # projected + scaled query heads
            pl.BlockSpec((1, T, E), lambda b: (0, 0, 0)),      # raw learned query (residual)
            pl.BlockSpec((Bb, S, E), lambda b: (b, 0, 0)),     # x, tiled over batch
            pl.BlockSpec((E, 2 * E), lambda b: (0, 0)),        # fused [wk | wv]
            pl.BlockSpec((1, 2 * E), lambda b: (0, 0)),        # fused [bk | bv]
            pl.BlockSpec((E, E), lambda b: (0, 0)),            # wo
            pl.BlockSpec((1, E), lambda b: (0, 0)),            # bo
        ],
        out_specs=(
            pl.BlockSpec((Bb, T, E), lambda b: (b, 0, 0)),
            pl.BlockSpec((Bb, H, T, S), lambda b: (b, 0, 0, 0)),
        ),
        scratch_shapes=[pltpu.VMEM((Bb, T, E), jnp.float32)],  # context assembly scratch
        compiler_params=pltpu.CompilerParams(
            dimension_semantics=("parallel",),                 # batch axis -> both TCs on v7x
            vmem_limit_bytes=vmem_limit),
    )(q_heads, query, x, wkv, bkv, wo, bo)

    return out, (attn,)


def _reference(x, query, wq, bq, wk, bk, wv, bv, wo, bo, num_heads):
    """Pure-JAX reference of the same forward (for the correctness check)."""
    B, S, E = x.shape
    T = query.shape[1]
    hd = E // num_heads
    q = jnp.broadcast_to(query @ wq + bq, (B, T, E))
    k = x @ wk + bk
    v = x @ wv + bv
    qh = q.reshape(B, T, num_heads, hd).transpose(0, 2, 1, 3)
    kh = k.reshape(B, S, num_heads, hd).transpose(0, 2, 1, 3)
    vh = v.reshape(B, S, num_heads, hd).transpose(0, 2, 1, 3)
    s = jnp.einsum("bhtd,bhsd->bhts", qh, kh) / math.sqrt(hd)
    attn = jax.nn.softmax(s, axis=-1)
    ctx = jnp.einsum("bhts,bhsd->bhtd", attn, vh)
    ctx = ctx.transpose(0, 2, 1, 3).reshape(B, T, E)
    out = ctx @ wo + bo + query
    return out, attn


if __name__ == "__main__":
    B, S, E, H, T = 2, 16, 32, 4, 8   # batch, src seq len, embed_dim, num_heads, target_len

    key = jax.random.PRNGKey(0)
    ks = jax.random.split(key, 10)
    x = jax.random.normal(ks[0], (B, S, E), dtype=jnp.float32)
    # nn.Parameter(trunc_normal_(empty(1, target_len, embed_dim), 0.0, 0.2))
    query = 0.2 * jax.random.truncated_normal(ks[1], -2.0, 2.0, (1, T, E), dtype=jnp.float32)
    wscale = 1.0 / math.sqrt(E)
    wq = jax.random.normal(ks[2], (E, E), jnp.float32) * wscale   # = in_proj_weight[:E].T
    wk = jax.random.normal(ks[3], (E, E), jnp.float32) * wscale   # = in_proj_weight[E:2E].T
    wv = jax.random.normal(ks[4], (E, E), jnp.float32) * wscale   # = in_proj_weight[2E:].T
    wo = jax.random.normal(ks[5], (E, E), jnp.float32) * wscale   # = out_proj.weight.T
    bq = jax.random.normal(ks[6], (1, E), jnp.float32) * 0.01
    bk = jax.random.normal(ks[7], (1, E), jnp.float32) * 0.01
    bv = jax.random.normal(ks[8], (1, E), jnp.float32) * 0.01
    bo = jax.random.normal(ks[9], (1, E), jnp.float32) * 0.01

    out, (attn,) = sa_sequence_shortener(x, query, wq, bq, wk, bk, wv, bv, wo, bo,
                                         num_heads=H)
    out, attn = jax.block_until_ready((out, attn))

    ref_out, ref_attn = _reference(x, query, wq, bq, wk, bk, wv, bv, wo, bo, H)
    assert out.shape == (B, T, E) and attn.shape == (B, H, T, S)
    # Tolerances account for pl.reciprocal(approx=True) in the softmax normalisation.
    assert jnp.allclose(out, ref_out, atol=5e-3, rtol=5e-3)
    assert jnp.allclose(attn, ref_attn, atol=5e-3, rtol=5e-3)

    print("KERNEL_OK")
</pallas_src>

<mosaic_0001>
module attributes {stable_mosaic.version = 11 : i64} {
  func.func @_sa_shortener_kernel(%arg0: i32, %arg1: memref<4x8x8xf32, #tpu.memory_space<vmem>>, %arg2: memref<1x8x32xf32, #tpu.memory_space<vmem>>, %arg3: memref<1x16x32xf32, #tpu.memory_space<vmem>>, %arg4: memref<32x64xf32, #tpu.memory_space<vmem>>, %arg5: memref<1x64xf32, #tpu.memory_space<vmem>>, %arg6: memref<32x32xf32, #tpu.memory_space<vmem>>, %arg7: memref<1x32xf32, #tpu.memory_space<vmem>>, %arg8: memref<1x8x32xf32, #tpu.memory_space<vmem>>, %arg9: memref<1x4x8x16xf32, #tpu.memory_space<vmem>>, %arg10: memref<1x8x32xf32, #tpu.memory_space<vmem>>) attributes {dimension_semantics = [#tpu.dimension_semantics<parallel>], iteration_bounds = array<i64: 2>, scalar_prefetch = 0 : i64, scratch_operands = 1 : i64, tpu.core_type = #tpu.core_type<tc>, window_params = [{pipeline_mode = #tpu.pipeline_mode<synchronous>, transform_indices = @transform_0, window_bounds = array<i64: 4, 8, 8>}, {pipeline_mode = #tpu.pipeline_mode<synchronous>, transform_indices = @transform_1, window_bounds = array<i64: 1, 8, 32>}, {transform_indices = @transform_2, window_bounds = array<i64: 1, 16, 32>}, {pipeline_mode = #tpu.pipeline_mode<synchronous>, transform_indices = @transform_3, window_bounds = array<i64: 32, 64>}, {pipeline_mode = #tpu.pipeline_mode<synchronous>, transform_indices = @transform_4, window_bounds = array<i64: 1, 64>}, {pipeline_mode = #tpu.pipeline_mode<synchronous>, transform_indices = @transform_5, window_bounds = array<i64: 32, 32>}, {pipeline_mode = #tpu.pipeline_mode<synchronous>, transform_indices = @transform_6, window_bounds = array<i64: 1, 32>}, {transform_indices = @transform_7, window_bounds = array<i64: 1, 8, 32>}, {transform_indices = @transform_8, window_bounds = array<i64: 1, 4, 8, 16>}]} {
    %c0 = arith.constant 0 : index
    %c0_0 = arith.constant 0 : index
    %c0_1 = arith.constant 0 : index
    %0 = vector.load %arg3[%c0, %c0_0, %c0_1] : memref<1x16x32xf32, #tpu.memory_space<vmem>>, vector<1x16x32xf32>
    %1 = vector.shape_cast %0 : vector<1x16x32xf32> to vector<16x32xf32>
    %c0_2 = arith.constant 0 : index
    %c0_3 = arith.constant 0 : index
    %2 = vector.load %arg4[%c0_2, %c0_3] : memref<32x64xf32, #tpu.memory_space<vmem>>, vector<32x64xf32>
    %cst = arith.constant dense<0.000000e+00> : vector<16x64xf32>
    %3 = tpu.matmul %1, %2, %cst {dimension_numbers = #tpu.dot_dimension_numbers<[1], [0], [0], [1], [0, 0, 1, 1], [], []>} : vector<16x32xf32>, vector<32x64xf32>, vector<16x64xf32> -> vector<16x64xf32>
    %c0_4 = arith.constant 0 : index
    %c0_5 = arith.constant 0 : index
    %4 = vector.load %arg5[%c0_4, %c0_5] : memref<1x64xf32, #tpu.memory_space<vmem>>, vector<1x64xf32>
    %5 = vector.broadcast %4 : vector<1x64xf32> to vector<16x64xf32>
    %6 = arith.addf %3, %5 : vector<16x64xf32>
    %7 = vector.extract_strided_slice %6 {offsets = [0, 0], sizes = [16, 32], strides = [1, 1]} : vector<16x64xf32> to vector<16x32xf32>
    %8 = vector.shape_cast %7 : vector<16x32xf32> to vector<1x16x32xf32>
    %9 = vector.extract_strided_slice %6 {offsets = [0, 32], sizes = [16, 32], strides = [1, 1]} : vector<16x64xf32> to vector<16x32xf32>
    %10 = vector.shape_cast %9 : vector<16x32xf32> to vector<1x16x32xf32>
    %c0_6 = arith.constant 0 : index
    %c0_7 = arith.constant 0 : index
    %c0_8 = arith.constant 0 : index
    %11 = vector.load %arg1[%c0_6, %c0_7, %c0_8] : memref<4x8x8xf32, #tpu.memory_space<vmem>>, vector<4x8x8xf32>
    %12 = vector.extract_strided_slice %11 {offsets = [0, 0, 0], sizes = [1, 8, 8], strides = [1, 1, 1]} : vector<4x8x8xf32> to vector<1x8x8xf32>
    %13 = vector.shape_cast %12 : vector<1x8x8xf32> to vector<8x8xf32>
    %14 = vector.shape_cast %13 : vector<8x8xf32> to vector<1x8x8xf32>
    %15 = vector.extract_strided_slice %8 {offsets = [0, 0, 0], sizes = [1, 16, 8], strides = [1, 1, 1]} : vector<1x16x32xf32> to vector<1x16x8xf32>
    %16 = vector.extract_strided_slice %10 {offsets = [0, 0, 0], sizes = [1, 16, 8], strides = [1, 1, 1]} : vector<1x16x32xf32> to vector<1x16x8xf32>
    "tpu.trace_start"() <{level = 10 : i32, message = "btd,bsd->bts"}> : () -> ()
    %cst_9 = arith.constant dense<0.000000e+00> : vector<1x8x16xf32>
    %17 = tpu.matmul %14, %15, %cst_9 {dimension_numbers = #tpu.dot_dimension_numbers<[2], [2], [1], [1], [0, 0, 0, 1, 1, 1], [0], [0]>} : vector<1x8x8xf32>, vector<1x16x8xf32>, vector<1x8x16xf32> -> vector<1x8x16xf32>
    "tpu.trace_stop"() : () -> ()
    %cst_10 = arith.constant dense<0xFF800000> : vector<1x8xf32>
    %18 = vector.multi_reduction <maximumf>, %17, %cst_10 [2] : vector<1x8x16xf32> to vector<1x8xf32>
    %19 = vector.shape_cast %18 : vector<1x8xf32> to vector<1x8x1xf32>
    %20 = vector.broadcast %19 : vector<1x8x1xf32> to vector<1x8x16xf32>
    %21 = arith.subf %17, %20 : vector<1x8x16xf32>
    %22 = math.exp %21 : vector<1x8x16xf32>
    %cst_11 = arith.constant dense<0.000000e+00> : vector<1x8xf32>
    %23 = vector.multi_reduction <add>, %22, %cst_11 [2] : vector<1x8x16xf32> to vector<1x8xf32>
    %24 = vector.shape_cast %23 : vector<1x8xf32> to vector<1x8x1xf32>
    %25 = tpu.reciprocal %24 {approx = true} : vector<1x8x1xf32> -> vector<1x8x1xf32>
    %26 = vector.broadcast %25 : vector<1x8x1xf32> to vector<1x8x16xf32>
    %27 = arith.mulf %22, %26 : vector<1x8x16xf32>
    "tpu.trace_start"() <{level = 10 : i32, message = "bts,bsd->btd"}> : () -> ()
    %cst_12 = arith.constant dense<0.000000e+00> : vector<1x8x8xf32>
    %28 = tpu.matmul %27, %16, %cst_12 {dimension_numbers = #tpu.dot_dimension_numbers<[2], [1], [1], [2], [0, 0, 0, 1, 1, 2], [0], [0]>} : vector<1x8x16xf32>, vector<1x16x8xf32>, vector<1x8x8xf32> -> vector<1x8x8xf32>
    "tpu.trace_stop"() : () -> ()
    %c0_13 = arith.constant 0 : index
    %c0_14 = arith.constant 0 : index
    %c0_15 = arith.constant 0 : index
    %29 = vector.load %arg10[%c0_13, %c0_14, %c0_15] : memref<1x8x32xf32, #tpu.memory_space<vmem>>, vector<1x8x8xf32>
    tpu.vector_store %arg10[%c0_13, %c0_14, %c0_15], %28 {strides = array<i32>} : memref<1x8x32xf32, #tpu.memory_space<vmem>>, vector<1x8x8xf32>,
    %30 = vector.extract_strided_slice %11 {offsets = [1, 0, 0], sizes = [1, 8, 8], strides = [1, 1, 1]} : vector<4x8x8xf32> to vector<1x8x8xf32>
    %31 = vector.shape_cast %30 : vector<1x8x8xf32> to vector<8x8xf32>
    %32 = vector.shape_cast %31 : vector<8x8xf32> to vector<1x8x8xf32>
    %33 = vector.extract_strided_slice %8 {offsets = [0, 0, 8], sizes = [1, 16, 8], strides = [1, 1, 1]} : vector<1x16x32xf32> to vector<1x16x8xf32>
    %34 = vector.extract_strided_slice %10 {offsets = [0, 0, 8], sizes = [1, 16, 8], strides = [1, 1, 1]} : vector<1x16x32xf32> to vector<1x16x8xf32>
    "tpu.trace_start"() <{level = 10 : i32, message = "btd,bsd->bts"}> : () -> ()
    %cst_16 = arith.constant dense<0.000000e+00> : vector<1x8x16xf32>
    %35 = tpu.matmul %32, %33, %cst_16 {dimension_numbers = #tpu.dot_dimension_numbers<[2], [2], [1], [1], [0, 0, 0, 1, 1, 1], [0], [0]>} : vector<1x8x8xf32>, vector<1x16x8xf32>, vector<1x8x16xf32> -> vector<1x8x16xf32>
    "tpu.trace_stop"() : () -> ()
    %cst_17 = arith.constant dense<0xFF800000> : vector<1x8xf32>
    %36 = vector.multi_reduction <maximumf>, %35, %cst_17 [2] : vector<1x8x16xf32> to vector<1x8xf32>
    %37 = vector.shape_cast %36 : vector<1x8xf32> to vector<1x8x1xf32>
    %38 = vector.broadcast %37 : vector<1x8x1xf32> to vector<1x8x16xf32>
    %39 = arith.subf %35, %38 : vector<1x8x16xf32>
    %40 = math.exp %39 : vector<1x8x16xf32>
    %cst_18 = arith.constant dense<0.000000e+00> : vector<1x8xf32>
    %41 = vector.multi_reduction <add>, %40, %cst_18 [2] : vector<1x8x16xf32> to vector<1x8xf32>
    %42 = vector.shape_cast %41 : vector<1x8xf32> to vector<1x8x1xf32>
    %43 = tpu.reciprocal %42 {approx = true} : vector<1x8x1xf32> -> vector<1x8x1xf32>
    %44 = vector.broadcast %43 : vector<1x8x1xf32> to vector<1x8x16xf32>
    %45 = arith.mulf %40, %44 : vector<1x8x16xf32>
    "tpu.trace_start"() <{level = 10 : i32, message = "bts,bsd->btd"}> : () -> ()
    %cst_19 = arith.constant dense<0.000000e+00> : vector<1x8x8xf32>
    %46 = tpu.matmul %45, %34, %cst_19 {dimension_numbers = #tpu.dot_dimension_numbers<[2], [1], [1], [2], [0, 0, 0, 1, 1, 2], [0], [0]>} : vector<1x8x16xf32>, vector<1x16x8xf32>, vector<1x8x8xf32> -> vector<1x8x8xf32>
    "tpu.trace_stop"() : () -> ()
    %c0_20 = arith.constant 0 : index
    %c0_21 = arith.constant 0 : index
    %c8 = arith.constant 8 : index
    %47 = vector.load %arg10[%c0_20, %c0_21, %c8] : memref<1x8x32xf32, #tpu.memory_space<vmem>>, vector<1x8x8xf32>
    tpu.vector_store %arg10[%c0_20, %c0_21, %c8], %46 {strides = array<i32>} : memref<1x8x32xf32, #tpu.memory_space<vmem>>, vector<1x8x8xf32>,
    %48 = vector.extract_strided_slice %11 {offsets = [2, 0, 0], sizes = [1, 8, 8], strides = [1, 1, 1]} : vector<4x8x8xf32> to vector<1x8x8xf32>
    %49 = vector.shape_cast %48 : vector<1x8x8xf32> to vector<8x8xf32>
    %50 = vector.shape_cast %49 : vector<8x8xf32> to vector<1x8x8xf32>
    %51 = vector.extract_strided_slice %8 {offsets = [0, 0, 16], sizes = [1, 16, 8], strides = [1, 1, 1]} : vector<1x16x32xf32> to vector<1x16x8xf32>
    %52 = vector.extract_strided_slice %10 {offsets = [0, 0, 16], sizes = [1, 16, 8], strides = [1, 1, 1]} : vector<1x16x32xf32> to vector<1x16x8xf32>
    "tpu.trace_start"() <{level = 10 : i32, message = "btd,bsd->bts"}> : () -> ()
    %cst_22 = arith.constant dense<0.000000e+00> : vector<1x8x16xf32>
    %53 = tpu.matmul %50, %51, %cst_22 {dimension_numbers = #tpu.dot_dimension_numbers<[2], [2], [1], [1], [0, 0, 0, 1, 1, 1], [0], [0]>} : vector<1x8x8xf32>, vector<1x16x8xf32>, vector<1x8x16xf32> -> vector<1x8x16xf32>
    "tpu.trace_stop"() : () -> ()
    %cst_23 = arith.constant dense<0xFF800000> : vector<1x8xf32>
    %54 = vector.multi_reduction <maximumf>, %53, %cst_23 [2] : vector<1x8x16xf32> to vector<1x8xf32>
    %55 = vector.shape_cast %54 : vector<1x8xf32> to vector<1x8x1xf32>
    %56 = vector.broadcast %55 : vector<1x8x1xf32> to vector<1x8x16xf32>
    %57 = arith.subf %53, %56 : vector<1x8x16xf32>
    %58 = math.exp %57 : vector<1x8x16xf32>
    %cst_24 = arith.constant dense<0.000000e+00> : vector<1x8xf32>
    %59 = vector.multi_reduction <add>, %58, %cst_24 [2] : vector<1x8x16xf32> to vector<1x8xf32>
    %60 = vector.shape_cast %59 : vector<1x8xf32> to vector<1x8x1xf32>
    %61 = tpu.reciprocal %60 {approx = true} : vector<1x8x1xf32> -> vector<1x8x1xf32>
    %62 = vector.broadcast %61 : vector<1x8x1xf32> to vector<1x8x16xf32>
    %63 = arith.mulf %58, %62 : vector<1x8x16xf32>
    "tpu.trace_start"() <{level = 10 : i32, message = "bts,bsd->btd"}> : () -> ()
    %cst_25 = arith.constant dense<0.000000e+00> : vector<1x8x8xf32>
    %64 = tpu.matmul %63, %52, %cst_25 {dimension_numbers = #tpu.dot_dimension_numbers<[2], [1], [1], [2], [0, 0, 0, 1, 1, 2], [0], [0]>} : vector<1x8x16xf32>, vector<1x16x8xf32>, vector<1x8x8xf32> -> vector<1x8x8xf32>
    "tpu.trace_stop"() : () -> ()
    %c0_26 = arith.constant 0 : index
    %c0_27 = arith.constant 0 : index
    %c16 = arith.constant 16 : index
    %65 = vector.load %arg10[%c0_26, %c0_27, %c16] : memref<1x8x32xf32, #tpu.memory_space<vmem>>, vector<1x8x8xf32>
    tpu.vector_store %arg10[%c0_26, %c0_27, %c16], %64 {strides = array<i32>} : memref<1x8x32xf32, #tpu.memory_space<vmem>>, vector<1x8x8xf32>,
    %66 = vector.extract_strided_slice %11 {offsets = [3, 0, 0], sizes = [1, 8, 8], strides = [1, 1, 1]} : vector<4x8x8xf32> to vector<1x8x8xf32>
    %67 = vector.shape_cast %66 : vector<1x8x8xf32> to vector<8x8xf32>
    %68 = vector.shape_cast %67 : vector<8x8xf32> to vector<1x8x8xf32>
    %69 = vector.extract_strided_slice %8 {offsets = [0, 0, 24], sizes = [1, 16, 8], strides = [1, 1, 1]} : vector<1x16x32xf32> to vector<1x16x8xf32>
    %70 = vector.extract_strided_slice %10 {offsets = [0, 0, 24], sizes = [1, 16, 8], strides = [1, 1, 1]} : vector<1x16x32xf32> to vector<1x16x8xf32>
    "tpu.trace_start"() <{level = 10 : i32, message = "btd,bsd->bts"}> : () -> ()
    %cst_28 = arith.constant dense<0.000000e+00> : vector<1x8x16xf32>
    %71 = tpu.matmul %68, %69, %cst_28 {dimension_numbers = #tpu.dot_dimension_numbers<[2], [2], [1], [1], [0, 0, 0, 1, 1, 1], [0], [0]>} : vector<1x8x8xf32>, vector<1x16x8xf32>, vector<1x8x16xf32> -> vector<1x8x16xf32>
    "tpu.trace_stop"() : () -> ()
    %cst_29 = arith.constant dense<0xFF800000> : vector<1x8xf32>
    %72 = vector.multi_reduction <maximumf>, %71, %cst_29 [2] : vector<1x8x16xf32> to vector<1x8xf32>
    %73 = vector.shape_cast %72 : vector<1x8xf32> to vector<1x8x1xf32>
    %74 = vector.broadcast %73 : vector<1x8x1xf32> to vector<1x8x16xf32>
    %75 = arith.subf %71, %74 : vector<1x8x16xf32>
    %76 = math.exp %75 : vector<1x8x16xf32>
    %cst_30 = arith.constant dense<0.000000e+00> : vector<1x8xf32>
    %77 = vector.multi_reduction <add>, %76, %cst_30 [2] : vector<1x8x16xf32> to vector<1x8xf32>
    %78 = vector.shape_cast %77 : vector<1x8xf32> to vector<1x8x1xf32>
    %79 = tpu.reciprocal %78 {approx = true} : vector<1x8x1xf32> -> vector<1x8x1xf32>
    %80 = vector.broadcast %79 : vector<1x8x1xf32> to vector<1x8x16xf32>
    %81 = arith.mulf %76, %80 : vector<1x8x16xf32>
    "tpu.trace_start"() <{level = 10 : i32, message = "bts,bsd->btd"}> : () -> ()
    %cst_31 = arith.constant dense<0.000000e+00> : vector<1x8x8xf32>
    %82 = tpu.matmul %81, %70, %cst_31 {dimension_numbers = #tpu.dot_dimension_numbers<[2], [1], [1], [2], [0, 0, 0, 1, 1, 2], [0], [0]>} : vector<1x8x16xf32>, vector<1x16x8xf32>, vector<1x8x8xf32> -> vector<1x8x8xf32>
    "tpu.trace_stop"() : () -> ()
    %c0_32 = arith.constant 0 : index
    %c0_33 = arith.constant 0 : index
    %c24 = arith.constant 24 : index
    %83 = vector.load %arg10[%c0_32, %c0_33, %c24] : memref<1x8x32xf32, #tpu.memory_space<vmem>>, vector<1x8x8xf32>
    tpu.vector_store %arg10[%c0_32, %c0_33, %c24], %82 {strides = array<i32>} : memref<1x8x32xf32, #tpu.memory_space<vmem>>, vector<1x8x8xf32>,
    %84 = vector.shape_cast %27 : vector<1x8x16xf32> to vector<1x1x8x16xf32>
    %85 = vector.shape_cast %45 : vector<1x8x16xf32> to vector<1x1x8x16xf32>
    %86 = vector.shape_cast %63 : vector<1x8x16xf32> to vector<1x1x8x16xf32>
    %87 = vector.shape_cast %81 : vector<1x8x16xf32> to vector<1x1x8x16xf32>
    %88 = tpu.concatenate %84, %85, %86, %87 in 1 : vector<1x1x8x16xf32>, vector<1x1x8x16xf32>, vector<1x1x8x16xf32>, vector<1x1x8x16xf32> -> vector<1x4x8x16xf32>
    %c0_34 = arith.constant 0 : index
    %c0_35 = arith.constant 0 : index
    %c0_36 = arith.constant 0 : index
    %c0_37 = arith.constant 0 : index
    %89 = vector.load %arg9[%c0_34, %c0_35, %c0_36, %c0_37] : memref<1x4x8x16xf32, #tpu.memory_space<vmem>>, vector<1x4x8x16xf32>
    tpu.vector_store %arg9[%c0_34, %c0_35, %c0_36, %c0_37], %88 {strides = array<i32>} : memref<1x4x8x16xf32, #tpu.memory_space<vmem>>, vector<1x4x8x16xf32>,
    %c0_38 = arith.constant 0 : index
    %c0_39 = arith.constant 0 : index
    %c0_40 = arith.constant 0 : index
    %90 = vector.load %arg10[%c0_38, %c0_39, %c0_40] : memref<1x8x32xf32, #tpu.memory_space<vmem>>, vector<1x8x32xf32>
    %91 = vector.shape_cast %90 : vector<1x8x32xf32> to vector<8x32xf32>
    %c0_41 = arith.constant 0 : index
    %c0_42 = arith.constant 0 : index
    %92 = vector.load %arg6[%c0_41, %c0_42] : memref<32x32xf32, #tpu.memory_space<vmem>>, vector<32x32xf32>
    %cst_43 = arith.constant dense<0.000000e+00> : vector<8x32xf32>
    %93 = tpu.matmul %91, %92, %cst_43 {dimension_numbers = #tpu.dot_dimension_numbers<[1], [0], [0], [1], [0, 0, 1, 1], [], []>} : vector<8x32xf32>, vector<32x32xf32>, vector<8x32xf32> -> vector<8x32xf32>
    %c0_44 = arith.constant 0 : index
    %c0_45 = arith.constant 0 : index
    %94 = vector.load %arg7[%c0_44, %c0_45] : memref<1x32xf32, #tpu.memory_space<vmem>>, vector<1x32xf32>
    %95 = vector.broadcast %94 : vector<1x32xf32> to vector<8x32xf32>
    %96 = arith.addf %93, %95 : vector<8x32xf32>
    %97 = vector.shape_cast %96 : vector<8x32xf32> to vector<1x8x32xf32>
    %c0_46 = arith.constant 0 : index
    %c0_47 = arith.constant 0 : index
    %c0_48 = arith.constant 0 : index
    %98 = vector.load %arg2[%c0_46, %c0_47, %c0_48] : memref<1x8x32xf32, #tpu.memory_space<vmem>>, vector<1x8x32xf32>
    %99 = arith.addf %97, %98 : vector<1x8x32xf32>
    %c0_49 = arith.constant 0 : index
    %c0_50 = arith.constant 0 : index
    %c0_51 = arith.constant 0 : index
    %100 = vector.load %arg8[%c0_49, %c0_50, %c0_51] : memref<1x8x32xf32, #tpu.memory_space<vmem>>, vector<1x8x32xf32>
    tpu.vector_store %arg8[%c0_49, %c0_50, %c0_51], %99 {strides = array<i32>} : memref<1x8x32xf32, #tpu.memory_space<vmem>>, vector<1x8x32xf32>,
    return
  }
  func.func @transform_0(%arg0: i32) -> (i32, i32, i32) {
    %c0_i32 = arith.constant 0 : i32
    %c0_i32_0 = arith.constant 0 : i32
    %c0_i32_1 = arith.constant 0 : i32
    %c0_i32_2 = arith.constant 0 : i32
    return %c0_i32, %c0_i32_0, %c0_i32_1 : i32, i32, i32
  }
  func.func @transform_1(%arg0: i32) -> (i32, i32, i32) {
    %c0_i32 = arith.constant 0 : i32
    %c0_i32_0 = arith.constant 0 : i32
    %c0_i32_1 = arith.constant 0 : i32
    %c0_i32_2 = arith.constant 0 : i32
    return %c0_i32, %c0_i32_0, %c0_i32_1 : i32, i32, i32
  }
  func.func @transform_2(%arg0: i32) -> (i32, i32, i32) {
    %c0_i32 = arith.constant 0 : i32
    %c0_i32_0 = arith.constant 0 : i32
    %c0_i32_1 = arith.constant 0 : i32
    return %arg0, %c0_i32, %c0_i32_0 : i32, i32, i32
  }
  func.func @transform_3(%arg0: i32) -> (i32, i32) {
    %c0_i32 = arith.constant 0 : i32
    %c0_i32_0 = arith.constant 0 : i32
    %c0_i32_1 = arith.constant 0 : i32
    return %c0_i32, %c0_i32_0 : i32, i32
  }
  func.func @transform_4(%arg0: i32) -> (i32, i32) {
    %c0_i32 = arith.constant 0 : i32
    %c0_i32_0 = arith.constant 0 : i32
    %c0_i32_1 = arith.constant 0 : i32
    return %c0_i32, %c0_i32_0 : i32, i32
  }
  func.func @transform_5(%arg0: i32) -> (i32, i32) {
    %c0_i32 = arith.constant 0 : i32
    %c0_i32_0 = arith.constant 0 : i32
    %c0_i32_1 = arith.constant 0 : i32
    return %c0_i32, %c0_i32_0 : i32, i32
  }
  func.func @transform_6(%arg0: i32) -> (i32, i32) {
    %c0_i32 = arith.constant 0 : i32
    %c0_i32_0 = arith.constant 0 : i32
    %c0_i32_1 = arith.constant 0 : i32
    return %c0_i32, %c0_i32_0 : i32, i32
  }
  func.func @transform_7(%arg0: i32) -> (i32, i32, i32) {
    %c0_i32 = arith.constant 0 : i32
    %c0_i32_0 = arith.constant 0 : i32
    %c0_i32_1 = arith.constant 0 : i32
    return %arg0, %c0_i32, %c0_i32_0 : i32, i32, i32
  }
  func.func @transform_8(%arg0: i32) -> (i32, i32, i32, i32) {
    %c0_i32 = arith.constant 0 : i32
    %c0_i32_0 = arith.constant 0 : i32
    %c0_i32_1 = arith.constant 0 : i32
    %c0_i32_2 = arith.constant 0 : i32
    return %arg0, %c0_i32, %c0_i32_0, %c0_i32_1 : i32, i32, i32, i32
  }
}

</mosaic_0001>

<llo_original>
// kernel: tpu_custom_call.1
$region0: #{tpu_custom_call.1}
  #allocation0 [shape = 'u32[]', space=smem, size = 0x4, offset = 0x4, fixed_abs, tag = 'smem constant byte address 0x4 - core index']
  #allocation1 [shape = 'u32[72,128]{1,0:T(1,128)}', space=vmem, size = 0x9000, scoped, tag = 'internal scratch']
  #allocation2 [shape = 'f32[1,8,32]{2,1,0:T(8,128)}', space=vmem, size = 0x1000, scoped, tag = 'scratch operand']
  %s0 = inlined_call_operand.hbm [shape: f32[4,8,8], index: 0, kind: input, shape index: {}]
  %s1 = inlined_call_operand.hbm [shape: f32[1,8,32], index: 1, kind: input, shape index: {}]
  %s2 = inlined_call_operand.hbm [shape: f32[2,16,32], index: 2, kind: input, shape index: {}]
  %s3 = inlined_call_operand.hbm [shape: f32[32,64], index: 3, kind: input, shape index: {}]
  %s4 = inlined_call_operand.vmem [shape: f32[1,64], index: 4, kind: input, shape index: {}]
  %s5 = inlined_call_operand.hbm [shape: f32[32,32], index: 5, kind: input, shape index: {}]
  %s6 = inlined_call_operand.vmem [shape: f32[1,32], index: 6, kind: input, shape index: {}]
  %s7 = inlined_call_operand.hbm [shape: f32[2,8,32], index: 7, kind: output, shape index: {0}]
  %s8 = inlined_call_operand.hbm [shape: f32[2,4,8,16], index: 8, kind: output, shape index: {1}]
  %9 = xla_tuple %s7, %s8
  %s10 = sld [smem:[#allocation0]]
  $region89: #{tpu_custom_call.1} parent=0
    _
  %s12 = ssub.s32 1, %s10
  %s13 = scalar_select 0, %s12, %s10
  $region1: #{tpu_custom_call.1} parent=0
    #allocation3 [shape = 'u8[16384]{0}', space=vmem, size = 0x4000, scoped, tag = 'input window, operand 0, single buffered']
    #allocation4 [shape = 's32[2]{0}', space=sflag, size = 0x8, scoped, tag = 'scoped memory for tpu_custom_call.1']
    #allocation5 [shape = 's32[2]{0}', space=sflag, size = 0x8, scoped, tag = 'scoped memory for tpu_custom_call.1']
    #allocation6 [shape = 'u8[4096]{0}', space=vmem, size = 0x1000, scoped, tag = 'input window, operand 1, single buffered']
    #allocation7 [shape = 's32[1]{0}', space=sflag, size = 0x4, scoped, tag = 'scoped memory for tpu_custom_call.1']
    #allocation8 [shape = 'u8[16384]{0}', space=vmem, size = 0x4000, scoped, tag = 'input window, operand 2']
    #allocation9 [shape = 'u8[16384]{0}', space=vmem, size = 0x4000, scoped, tag = 'input window, operand 3, single buffered']
    #allocation10 [shape = 'u8[16384]{0}', space=vmem, size = 0x4000, scoped, tag = 'input window, operand 5, single buffered']
    #allocation11 [shape = 's32[1]{0}', space=sflag, size = 0x4, scoped, tag = 'scoped memory for tpu_custom_call.1']
    #allocation12 [shape = 'u8[8192]{0}', space=vmem, size = 0x2000, scoped, tag = 'output window, operand 0']
    #allocation13 [shape = 'u8[32768]{0}', space=vmem, size = 0x8000, scoped, tag = 'output window, operand 1']
    #allocation14 [shape = 's32[2]{0}', space=sflag, size = 0x8, scoped, tag = 'scoped memory for tpu_custom_call.1']
    %14 = vsyncpa [#allocation4], 0
    %15 = vsyncpa [#allocation7], 0
    %16 = vsyncpa [#allocation11], 0
    %17 = vsyncpa [#allocation5], 0
    %s18 = scalar_lea.sflag [#allocation5], 1
    %19 = vsyncpa %s18, 0
    %20 = vsyncpa [#allocation14], 0
    %s21 = scalar_lea.sflag [#allocation14], 1
    %22 = vsyncpa %s21, 0
    loop: start=0, step=1, limit=4
    $region2: #{tpu_custom_call.1} parent=1 // loop_pre_header
      _
    $region3: #{tpu_custom_call.1} parent=1 // loop_header
      %s24 = sphi 0, %s28
      %p25 = scmp.ge.s32.totalorder %s24, 4
      %s32 = sphi 0, %s32
      %s34 = sphi 0, %s32
      %s35 = sphi 0, %s34
      %s49 = sphi 0, %s35
      %s53 = sphi 0, %s53
      %s55 = sphi 0, %s53
      %s56 = sphi 0, %s55
      %s70 = sphi 0, %s56
      %s76 = sphi 0, %s78
      %s79 = sphi 0, %s76
      %s80 = sphi 0, %s79
      %s96 = sphi 0, %s80
      %s100 = sphi 0, %s100
      %s102 = sphi 0, %s100
      %s103 = sphi 0, %s102
      %s117 = sphi 0, %s103
      %s121 = sphi 0, %s121
      %s123 = sphi 0, %s121
      %s124 = sphi 0, %s123
      %s138 = sphi 0, %s124
      %s142 = sphi 0, %s142
      %s144 = sphi 0, %s142
      %s145 = sphi 0, %s144
      %s159 = sphi 0, %s145
      %s163 = sphi 0, %s163
      %s165 = sphi 0, %s163
      %s166 = sphi 0, %s165
      %s180 = sphi 0, %s166
      %s186 = sphi 0, %s188
      %s189 = sphi 0, %s186
      %s190 = sphi 0, %s189
      %s206 = sphi 0, %s190
      %s212 = sphi 0, %s214
      %s215 = sphi 0, %s212
      %s216 = sphi 0, %s215
      %s232 = sphi 0, %s216
    $region4: #{tpu_custom_call.1} parent=1 // loop_header_branch
      %27 = sbr.rel (%p25) target = $region8
    $region5: #{tpu_custom_call.1} parent=1 // loop_body
      %s29 = ssub.s32 %s24, 1
      %s30 = ssub.s32 %s24, 2
      %s31 = sadd.s32 %s24, 1
      %s33 = sadd.s32 %s32, 1
      %p36 = scmp.eq.s32.totalorder %s24, 1
      %p37 = scmp.ne.s32.totalorder %s32, %s34
      %p38 = scmp.eq.s32.totalorder %s24, 0
      %p39 = por %p37, %p38
      %p40 = scmp.ne.s32.totalorder %s32, %s34
      %p41 = scmp.eq.s32.totalorder %s29, 1
      %p42 = por %p40, %p41
      %p43 = scmp.ne.s32.totalorder %s34, %s35
      %p44 = scmp.eq.s32.totalorder %s29, 0
      %p45 = por %p43, %p44
      %p46 = scmp.ne.s32.totalorder %s34, %s35
      %p47 = scmp.eq.s32.totalorder %s30, 1
      %p48 = por %p46, %p47
      %p50 = scmp.ne.s32.totalorder %s35, %s49
      %p51 = scmp.eq.s32.totalorder %s30, 0
      %p52 = por %p50, %p51
      %s54 = sadd.s32 %s53, 1
      %p57 = scmp.eq.s32.totalorder %s24, 1
      %p58 = scmp.ne.s32.totalorder %s53, %s55
      %p59 = scmp.eq.s32.totalorder %s24, 0
      %p60 = por %p58, %p59
      %p61 = scmp.ne.s32.totalorder %s53, %s55
      %p62 = scmp.eq.s32.totalorder %s29, 1
      %p63 = por %p61, %p62
      %p64 = scmp.ne.s32.totalorder %s55, %s56
      %p65 = scmp.eq.s32.totalorder %s29, 0
      %p66 = por %p64, %p65
      %p67 = scmp.ne.s32.totalorder %s55, %s56
      %p68 = scmp.eq.s32.totalorder %s30, 1
      %p69 = por %p67, %p68
      %p71 = scmp.ne.s32.totalorder %s56, %s70
      %p72 = scmp.eq.s32.totalorder %s30, 0
      %p73 = por %p71, %p72
      %s74 = ssub.s32 %s24, %s31
      %p75 = scmp.eq.s32.totalorder %s74, 0
      %s77 = sadd.s32 %s76, 1
      %s78 = scalar_select %p75, %s76, %s77
      %p81 = pneg %p75
      %p82 = scmp.eq.s32.totalorder %s24, 1
      %p83 = por %p81, %p82
      %p84 = scmp.ne.s32.totalorder %s76, %s79
      %p85 = scmp.eq.s32.totalorder %s24, 0
      %p86 = por %p84, %p85
      %p87 = scmp.ne.s32.totalorder %s76, %s79
      %p88 = scmp.eq.s32.totalorder %s29, 1
      %p89 = por %p87, %p88
      %p90 = scmp.ne.s32.totalorder %s79, %s80
      %p91 = scmp.eq.s32.totalorder %s29, 0
      %p92 = por %p90, %p91
      %p93 = scmp.ne.s32.totalorder %s79, %s80
      %p94 = scmp.eq.s32.totalorder %s30, 1
      %p95 = por %p93, %p94
      %p97 = scmp.ne.s32.totalorder %s80, %s96
      %p98 = scmp.eq.s32.totalorder %s30, 0
      %p99 = por %p97, %p98
      %s101 = sadd.s32 %s100, 1
      %p104 = scmp.eq.s32.totalorder %s24, 1
      %p105 = scmp.ne.s32.totalorder %s100, %s102
      %p106 = scmp.eq.s32.totalorder %s24, 0
      %p107 = por %p105, %p106
      %p108 = scmp.ne.s32.totalorder %s100, %s102
      %p109 = scmp.eq.s32.totalorder %s29, 1
      %p110 = por %p108, %p109
      %p111 = scmp.ne.s32.totalorder %s102, %s103
      %p112 = scmp.eq.s32.totalorder %s29, 0
      %p113 = por %p111, %p112
      %p114 = scmp.ne.s32.totalorder %s102, %s103
      %p115 = scmp.eq.s32.totalorder %s30, 1
      %p116 = por %p114, %p115
      %p118 = scmp.ne.s32.totalorder %s103, %s117
      %p119 = scmp.eq.s32.totalorder %s30, 0
      %p120 = por %p118, %p119
      %s122 = sadd.s32 %s121, 1
      %p125 = scmp.eq.s32.totalorder %s24, 1
      %p126 = scmp.ne.s32.totalorder %s121, %s123
      %p127 = scmp.eq.s32.totalorder %s24, 0
      %p128 = por %p126, %p127
      %p129 = scmp.ne.s32.totalorder %s121, %s123
      %p130 = scmp.eq.s32.totalorder %s29, 1
      %p131 = por %p129, %p130
      %p132 = scmp.ne.s32.totalorder %s123, %s124
      %p133 = scmp.eq.s32.totalorder %s29, 0
      %p134 = por %p132, %p133
      %p135 = scmp.ne.s32.totalorder %s123, %s124
      %p136 = scmp.eq.s32.totalorder %s30, 1
      %p137 = por %p135, %p136
      %p139 = scmp.ne.s32.totalorder %s124, %s138
      %p140 = scmp.eq.s32.totalorder %s30, 0
      %p141 = por %p139, %p140
      %s143 = sadd.s32 %s142, 1
      %p146 = scmp.eq.s32.totalorder %s24, 1
      %p147 = scmp.ne.s32.totalorder %s142, %s144
      %p148 = scmp.eq.s32.totalorder %s24, 0
      %p149 = por %p147, %p148
      %p150 = scmp.ne.s32.totalorder %s142, %s144
      %p151 = scmp.eq.s32.totalorder %s29, 1
      %p152 = por %p150, %p151
      %p153 = scmp.ne.s32.totalorder %s144, %s145
      %p154 = scmp.eq.s32.totalorder %s29, 0
      %p155 = por %p153, %p154
      %p156 = scmp.ne.s32.totalorder %s144, %s145
      %p157 = scmp.eq.s32.totalorder %s30, 1
      %p158 = por %p156, %p157
      %p160 = scmp.ne.s32.totalorder %s145, %s159
      %p161 = scmp.eq.s32.totalorder %s30, 0
      %p162 = por %p160, %p161
      %s164 = sadd.s32 %s163, 1
      %p167 = scmp.eq.s32.totalorder %s24, 1
      %p168 = scmp.ne.s32.totalorder %s163, %s165
      %p169 = scmp.eq.s32.totalorder %s24, 0
      %p170 = por %p168, %p169
      %p171 = scmp.ne.s32.totalorder %s163, %s165
      %p172 = scmp.eq.s32.totalorder %s29, 1
      %p173 = por %p171, %p172
      %p174 = scmp.ne.s32.totalorder %s165, %s166
      %p175 = scmp.eq.s32.totalorder %s29, 0
      %p176 = por %p174, %p175
      %p177 = scmp.ne.s32.totalorder %s165, %s166
      %p178 = scmp.eq.s32.totalorder %s30, 1
      %p179 = por %p177, %p178
      %p181 = scmp.ne.s32.totalorder %s166, %s180
      %p182 = scmp.eq.s32.totalorder %s30, 0
      %p183 = por %p181, %p182
      %s184 = ssub.s32 %s24, %s31
      %p185 = scmp.eq.s32.totalorder %s184, 0
      %s187 = sadd.s32 %s186, 1
      %s188 = scalar_select %p185, %s186, %s187
      %p191 = pneg %p185
      %p192 = scmp.eq.s32.totalorder %s24, 1
      %p193 = por %p191, %p192
      %p194 = scmp.ne.s32.totalorder %s186, %s189
      %p195 = scmp.eq.s32.totalorder %s24, 0
      %p196 = por %p194, %p195
      %p197 = scmp.ne.s32.totalorder %s186, %s189
      %p198 = scmp.eq.s32.totalorder %s29, 1
      %p199 = por %p197, %p198
      %p200 = scmp.ne.s32.totalorder %s189, %s190
      %p201 = scmp.eq.s32.totalorder %s29, 0
      %p202 = por %p200, %p201
      %p203 = scmp.ne.s32.totalorder %s189, %s190
      %p204 = scmp.eq.s32.totalorder %s30, 1
      %p205 = por %p203, %p204
      %p207 = scmp.ne.s32.totalorder %s190, %s206
      %p208 = scmp.eq.s32.totalorder %s30, 0
      %p209 = por %p207, %p208
      %s210 = ssub.s32 %s24, %s31
      %p211 = scmp.eq.s32.totalorder %s210, 0
      %s213 = sadd.s32 %s212, 1
      %s214 = scalar_select %p211, %s212, %s213
      %p217 = pneg %p211
      %p218 = scmp.eq.s32.totalorder %s24, 1
      %p219 = por %p217, %p218
      %p220 = scmp.ne.s32.totalorder %s212, %s215
      %p221 = scmp.eq.s32.totalorder %s24, 0
      %p222 = por %p220, %p221
      %p223 = scmp.ne.s32.totalorder %s212, %s215
      %p224 = scmp.eq.s32.totalorder %s29, 1
      %p225 = por %p223, %p224
      %p226 = scmp.ne.s32.totalorder %s215, %s216
      %p227 = scmp.eq.s32.totalorder %s29, 0
      %p228 = por %p226, %p227
      %p229 = scmp.ne.s32.totalorder %s215, %s216
      %p230 = scmp.eq.s32.totalorder %s30, 1
      %p231 = por %p229, %p230
      %p233 = scmp.ne.s32.totalorder %s216, %s232
      %p234 = scmp.eq.s32.totalorder %s30, 0
      %p235 = por %p233, %p234
      %p236 = scmp.le.s32.totalorder 1, %s24
      %p237 = scmp.lt.s32.totalorder %s24, 3
      %p238 = pnand %p236, %p237
      %p239 = pneg %p238
      // Predicated region
      $region9: #{tpu_custom_call.1} parent=5 // pred_check
        _
      $region10: #{tpu_custom_call.1} parent=5 // pred_check_branch
        %241 = sbr.rel (%p238) target = $region12
      $region11: #{tpu_custom_call.1} parent=5 // pred_region
        %s242 = ssub.s32 %s24, 1
        // Predicated region
        $region13: #{tpu_custom_call.1} parent=11 // pred_check
          %p243 = pneg %p45
        $region14: #{tpu_custom_call.1} parent=11 // pred_check_branch
          %245 = sbr.rel (%p243) target = $region16
        $region15: #{tpu_custom_call.1} parent=11 // pred_region
          %247 = vsyncadd [#allocation4], 0
          %s248 = sshll.u32 %s0, 4
          %s249 = int_to_ptr.hbm [resolvable:$true] %s248
          %s250 = sshll.u32 [#allocation3], 4
          %s251 = int_to_ptr.vmem [resolvable:$true] %s250
          %256 = dma.hbm_to_vmem [thread:$0]  %s249, 512, %s251, [#allocation4], 128, 128, 8
        $region16: #{tpu_custom_call.1} parent=11 // pred_fallthru
          _
        // Predicated region
        $region17: #{tpu_custom_call.1} parent=11 // pred_check
          %p257 = pneg %p66
        $region18: #{tpu_custom_call.1} parent=11 // pred_check_branch
          %259 = sbr.rel (%p257) target = $region20
        $region19: #{tpu_custom_call.1} parent=11 // pred_region
          %261 = vsyncadd [#allocation7], 0
          %s263 = sshll.u32 %s1, 4
          %s264 = int_to_ptr.hbm [resolvable:$true] %s263
          %s265 = sshll.u32 [#allocation6], 4
          %s266 = int_to_ptr.vmem [resolvable:$true] %s265
          %268 = dma.hbm_to_vmem [thread:$0]  %s264, 128, %s266, [#allocation7]
        $region20: #{tpu_custom_call.1} parent=11 // pred_fallthru
          _
        // Predicated region
        $region21: #{tpu_custom_call.1} parent=11 // pred_check
          %p269 = pneg %p113
        $region22: #{tpu_custom_call.1} parent=11 // pred_check_branch
          %271 = sbr.rel (%p269) target = $region24
        $region23: #{tpu_custom_call.1} parent=11 // pred_region
          %273 = vsyncadd [#allocation7], 0
          %s274 = sshll.u32 %s3, 4
          %s275 = int_to_ptr.hbm [resolvable:$true] %s274
          %s276 = sshll.u32 [#allocation9], 4
          %s277 = int_to_ptr.vmem [resolvable:$true] %s276
          %282 = dma.hbm_to_vmem [thread:$0]  %s275, 512, %s277, [#allocation7], 128, 128, 8
        $region24: #{tpu_custom_call.1} parent=11 // pred_fallthru
          _
        // Predicated region
        $region25: #{tpu_custom_call.1} parent=11 // pred_check
          %p283 = pneg %p134
        $region26: #{tpu_custom_call.1} parent=11 // pred_check_branch
          %285 = sbr.rel (%p283) target = $region28
        $region27: #{tpu_custom_call.1} parent=11 // pred_region
          _
        $region28: #{tpu_custom_call.1} parent=11 // pred_fallthru
          _
        // Predicated region
        $region29: #{tpu_custom_call.1} parent=11 // pred_check
          %p286 = pneg %p155
        $region30: #{tpu_custom_call.1} parent=11 // pred_check_branch
          %288 = sbr.rel (%p286) target = $region32
        $region31: #{tpu_custom_call.1} parent=11 // pred_region
          %290 = vsyncadd [#allocation11], 0
          %s291 = sshll.u32 %s5, 4
          %s292 = int_to_ptr.hbm [resolvable:$true] %s291
          %s293 = sshll.u32 [#allocation10], 4
          %s294 = int_to_ptr.vmem [resolvable:$true] %s293
          %299 = dma.hbm_to_vmem [thread:$0]  %s292, 512, %s294, [#allocation11], 128, 128, 8
        $region32: #{tpu_custom_call.1} parent=11 // pred_fallthru
          _
        // Predicated region
        $region33: #{tpu_custom_call.1} parent=11 // pred_check
          %p300 = pneg %p176
        $region34: #{tpu_custom_call.1} parent=11 // pred_check_branch
          %302 = sbr.rel (%p300) target = $region36
        $region35: #{tpu_custom_call.1} parent=11 // pred_region
          _
        $region36: #{tpu_custom_call.1} parent=11 // pred_fallthru
          _
      $region12: #{tpu_custom_call.1} parent=5 // pred_fallthru
        _
      %p303 = scmp.lt.s32.totalorder %s24, 2
      // Predicated region
      $region37: #{tpu_custom_call.1} parent=5 // pred_check
        %p304 = pneg %p303
      $region38: #{tpu_custom_call.1} parent=5 // pred_check_branch
        %306 = sbr.rel (%p304) target = $region40
      $region39: #{tpu_custom_call.1} parent=5 // pred_region
        // Predicated region
        $region41: #{tpu_custom_call.1} parent=39 // pred_check
          %p307 = pneg %p86
        $region42: #{tpu_custom_call.1} parent=39 // pred_check_branch
          %309 = sbr.rel (%p307) target = $region44
        $region43: #{tpu_custom_call.1} parent=39 // pred_region
          %s310 = sand.u32 %s24, 1
          %s311 = scalar_lea.sflag [#allocation4], %s310
          %s312 = sand.u32 %s76, 1
          %s313 = smul.addr %s312, 16
          %s314 = scalar_lea.vmem [#allocation8], %s313
          %316 = vsyncadd %s311, 0
          %s317 = smul.addr %s24, 2
          %s318 = smul.addr %s317, 8
          %s319 = scalar_lea.hbm %s2, %s318
          %s320 = sshll.u32 %s319, 4
          %s321 = int_to_ptr.hbm [resolvable:$true] %s320
          %s322 = sshll.u32 %s314, 4
          %s323 = int_to_ptr.vmem [resolvable:$true] %s322
          %328 = dma.hbm_to_vmem [thread:$0]  %s321, 256, %s323, %s311, 128, 128, 8
        $region44: #{tpu_custom_call.1} parent=39 // pred_fallthru
          _
      $region40: #{tpu_custom_call.1} parent=5 // pred_fallthru
        _
      %p329 = scmp.le.s32.totalorder 1, %s24
      %p330 = scmp.lt.s32.totalorder %s24, 3
      %p331 = pnand %p329, %p330
      %p332 = pneg %p331
      // Predicated region
      $region45: #{tpu_custom_call.1} parent=5 // pred_check
        _
      $region46: #{tpu_custom_call.1} parent=5 // pred_check_branch
        %334 = sbr.rel (%p331) target = $region48
      $region47: #{tpu_custom_call.1} parent=5 // pred_region
        %s335 = ssub.s32 %s24, 1
        // Predicated region
        $region49: #{tpu_custom_call.1} parent=47 // pred_check
          %p336 = pneg %p45
        $region50: #{tpu_custom_call.1} parent=47 // pred_check_branch
          %338 = sbr.rel (%p336) target = $region52
        $region51: #{tpu_custom_call.1} parent=47 // pred_region
          %340 = dma.done [#allocation4], 512
        $region52: #{tpu_custom_call.1} parent=47 // pred_fallthru
          _
        // Predicated region
        $region53: #{tpu_custom_call.1} parent=47 // pred_check
          %p341 = pneg %p66
        $region54: #{tpu_custom_call.1} parent=47 // pred_check_branch
          %343 = sbr.rel (%p341) target = $region56
        $region55: #{tpu_custom_call.1} parent=47 // pred_region
          %345 = dma.done [#allocation7], 128
        $region56: #{tpu_custom_call.1} parent=47 // pred_fallthru
          _
        %s346 = sand.u32 %s29, 1
        %s347 = scalar_lea.sflag [#allocation4], %s346
        %s348 = sand.u32 %s79, 1
        %s349 = smul.addr %s348, 16
        %s350 = scalar_lea.vmem [#allocation8], %s349
        // Predicated region
        $region57: #{tpu_custom_call.1} parent=47 // pred_check
          %p351 = pneg %p92
        $region58: #{tpu_custom_call.1} parent=47 // pred_check_branch
          %353 = sbr.rel (%p351) target = $region60
        $region59: #{tpu_custom_call.1} parent=47 // pred_region
          %355 = dma.done %s347, 256
        $region60: #{tpu_custom_call.1} parent=47 // pred_fallthru
          _
        // Predicated region
        $region61: #{tpu_custom_call.1} parent=47 // pred_check
          %p356 = pneg %p113
        $region62: #{tpu_custom_call.1} parent=47 // pred_check_branch
          %358 = sbr.rel (%p356) target = $region64
        $region63: #{tpu_custom_call.1} parent=47 // pred_region
          %360 = dma.done [#allocation7], 512
        $region64: #{tpu_custom_call.1} parent=47 // pred_fallthru
          _
        // Predicated region
        $region65: #{tpu_custom_call.1} parent=47 // pred_check
          %p361 = pneg %p155
        $region66: #{tpu_custom_call.1} parent=47 // pred_check_branch
          %363 = sbr.rel (%p361) target = $region68
        $region67: #{tpu_custom_call.1} parent=47 // pred_region
          %365 = dma.done [#allocation11], 512
        $region68: #{tpu_custom_call.1} parent=47 // pred_fallthru
          _
        %p366 = pneg %p45
        %p367 = pneg %p42
        %p368 = pneg %p66
        %p369 = pneg %p63
        %s370 = sand.u32 %s29, 1
        %s371 = scalar_lea.sflag [#allocation4], %s370
        %s372 = sand.u32 %s79, 1
        %s373 = smul.addr %s372, 16
        %s374 = scalar_lea.vmem [#allocation8], %s373
        %p375 = pneg %p92
        %p376 = pneg %p89
        %p377 = pneg %p113
        %p378 = pneg %p110
        %p379 = pneg %p134
        %p380 = pneg %p131
        %p381 = pneg %p155
        %p382 = pneg %p152
        %p383 = pneg %p176
        %p384 = pneg %p173
        %p385 = pneg %p202
        %p386 = pneg %p199
        %s387 = sand.u32 %s189, 1
        %s388 = scalar_lea.sflag [#allocation5], %s387
        %s389 = sand.u32 %s189, 1
        %s390 = smul.addr %s389, 8
        %s391 = scalar_lea.vmem [#allocation12], %s390
        %p392 = pneg %p228
        %p393 = pneg %p225
        %s394 = sand.u32 %s215, 1
        %s395 = scalar_lea.sflag [#allocation14], %s394
        %s396 = sand.u32 %s215, 1
        %s397 = smul.addr %s396, 32
        %s398 = scalar_lea.vmem [#allocation13], %s397
        %v399 = vld [vmem:[%s350] sm:$0xff]
        %v400 = vld [vmem:[%s350 + $0x8] sm:$0xff]
        %v401 = vld [vmem:[#allocation9] sm:$0xff]
        %v402 = vld [vmem:[#allocation9 + $0x8] sm:$0xff]
        %v403 = vld [vmem:[#allocation9 + $0x10] sm:$0xff]
        %v404 = vld [vmem:[#allocation9 + $0x18] sm:$0xff]
        %v405 = vld [vmem:[%s4] sm:$0x1]
        %v407 = vperm.slane %v405, 0
        %vm409 = vcmask 261120
        %v411 = vsel %vm409, %v399, 0
        %v414 = vsel %vm409, %v400, 0
        %416 = vmatpush.msra.mxu0 0.0
        %417 = vmatpush.msra.mxu0 0.0
        %418 = vmatpush.msra.mxu0 0.0
        %419 = vmatpush.msra.mxu0 0.0
        %420 = vmatpush.msra.mxu0 0.0
        %421 = vmatpush.msra.mxu0 0.0
        %422 = vmatpush.msra.mxu0 0.0
        %423 = vmatpush.msra.mxu0 0.0
        %424 = vmatpush.msra.mxu0 0.0
        %425 = vmatpush.msra.mxu0 0.0
        %426 = vmatpush.msra.mxu0 0.0
        %427 = vmatpush.msra.mxu0 0.0
        %428 = vmatpush.msra.mxu0 %v404
        %429 = vmatpush.msra.mxu0 %v403
        %430 = vmatpush.msra.mxu0 %v402
        %431 = vmatpush.msra.mxu0 %v401
        %432 = vmatmul.f32.gmra.mxu0 %v411
        %v433 = vpop.f32.mrf.mxu0
        %v434 = vadd.f32 %v407, %v433
        %435 = vmatmul.f32.gmra.mxu0 %v414
        %v436 = vpop.f32.mrf.mxu0
        %v437 = vadd.f32 %v407, %v436
        %438 = vdwg.mxu0
        %v439 = vld [vmem:[#allocation3] sm:$0xff]
        %v440 = vld [vmem:[#allocation3 + $0x8] sm:$0xff]
        %v441 = vld [vmem:[#allocation3 + $0x10] sm:$0xff]
        %v442 = vld [vmem:[#allocation3 + $0x18] sm:$0xff]
        %vm443 = vcmask 64512
        %v445 = vsel %vm443, %v439, 0
        %v448 = vsel %vm443, %v434, 0
        %v451 = vsel %vm443, %v437, 0
        %453 = vmatpush.xpose.msra.mxu0 0.0
        %454 = vmatpush.xpose.msra.mxu0 0.0
        %455 = vmatpush.xpose.msra.mxu0 0.0
        %456 = vmatpush.xpose.msra.mxu0 0.0
        %457 = vmatpush.xpose.msra.mxu0 0.0
        %458 = vmatpush.xpose.msra.mxu0 0.0
        %459 = vmatpush.xpose.msra.mxu0 0.0
        %460 = vmatpush.xpose.msra.mxu0 0.0
        %461 = vmatpush.xpose.msra.mxu0 0.0
        %462 = vmatpush.xpose.msra.mxu0 0.0
        %463 = vmatpush.xpose.msra.mxu0 0.0
        %464 = vmatpush.xpose.msra.mxu0 0.0
        %465 = vmatpush.xpose.msra.mxu0 0.0
        %466 = vmatpush.xpose.msra.mxu0 0.0
        %467 = vmatpush.xpose.msra.mxu0 %v451
        %468 = vmatpush.xpose.msra.mxu0 %v448
        %469 = vmatmul.f32.gmra.mxu0 %v445
        %v470 = vpop.f32.mrf.mxu0
        %v471 = vadd.f32 0.0, %v470
        %472 = vdwg.mxu0
        %vm473 = vcmask 130048
        %v474 = vsel %vm473, %v471, -inf
        %475 = vmax.xlane.f32.xlu0 %v474
        %v476 = vpop.xlane.xlu0 %475
        %v477 = vsub.f32 %v471, %v476
        %v478 = vmul.f32 %v477, 1.442695
        %v479 = vpow.pop %v478
        %v480 = vsel %vm473, %v479, 0.0
        %481 = vadd.xlane.f32.xlu0 %v480
        %v482 = vpop.xlane.xlu0 %481
        %v483 = vrcp.pop %v482
        %v484 = vmul.f32 %v479, %v483
        %485 = vrot.lane.b32.xlu0 %v434, 96
        %v486 = vpop.permute.xlu0 %485
        %487 = vrot.lane.b32.xlu0 %v437, 96
        %v488 = vpop.permute.xlu0 %487
        %v492 = vsel %vm473, %v484, 0
        %494 = vmatpush.msra.mxu0 0.0
        %495 = vmatpush.msra.mxu0 0.0
        %496 = vmatpush.msra.mxu0 0.0
        %497 = vmatpush.msra.mxu0 0.0
        %498 = vmatpush.msra.mxu0 0.0
        %499 = vmatpush.msra.mxu0 0.0
        %500 = vmatpush.msra.mxu0 0.0
        %501 = vmatpush.msra.mxu0 0.0
        %502 = vmatpush.msra.mxu0 0.0
        %503 = vmatpush.msra.mxu0 0.0
        %504 = vmatpush.msra.mxu0 0.0
        %505 = vmatpush.msra.mxu0 0.0
        %506 = vmatpush.msra.mxu0 0.0
        %507 = vmatpush.msra.mxu0 0.0
        %508 = vmatpush.msra.mxu0 %v488
        %509 = vmatpush.msra.mxu0 %v486
        %510 = vmatmul.f32.gmra.mxu0 %v492
        %v511 = vpop.f32.mrf.mxu0
        %v512 = vadd.f32 0.0, %v511
        %513 = vdwg.mxu0
        %514 = vst.msk [vmem:[#allocation2] sm:$0xff] %vm443, %v512
        %515 = vrot.lane.b32.xlu0 %v434, 120
        %v516 = vpop.permute.xlu0 %515
        %517 = vrot.lane.b32.xlu0 %v437, 120
        %v518 = vpop.permute.xlu0 %517
        %v520 = vsel %vm443, %v440, 0
        %v522 = vsel %vm443, %v516, 0
        %v524 = vsel %vm443, %v518, 0
        %526 = vmatpush.xpose.msra.mxu0 0.0
        %527 = vmatpush.xpose.msra.mxu0 0.0
        %528 = vmatpush.xpose.msra.mxu0 0.0
        %529 = vmatpush.xpose.msra.mxu0 0.0
        %530 = vmatpush.xpose.msra.mxu0 0.0
        %531 = vmatpush.xpose.msra.mxu0 0.0
        %532 = vmatpush.xpose.msra.mxu0 0.0
        %533 = vmatpush.xpose.msra.mxu0 0.0
        %534 = vmatpush.xpose.msra.mxu0 0.0
        %535 = vmatpush.xpose.msra.mxu0 0.0
        %536 = vmatpush.xpose.msra.mxu0 0.0
        %537 = vmatpush.xpose.msra.mxu0 0.0
        %538 = vmatpush.xpose.msra.mxu0 0.0
        %539 = vmatpush.xpose.msra.mxu0 0.0
        %540 = vmatpush.xpose.msra.mxu0 %v524
        %541 = vmatpush.xpose.msra.mxu0 %v522
        %542 = vmatmul.f32.gmra.mxu0 %v520
        %v543 = vpop.f32.mrf.mxu0
        %v544 = vadd.f32 0.0, %v543
        %545 = vdwg.mxu0
        %v546 = vsel %vm473, %v544, -inf
        %547 = vmax.xlane.f32.xlu0 %v546
        %v548 = vpop.xlane.xlu0 %547
        %v549 = vsub.f32 %v544, %v548
        %v550 = vmul.f32 %v549, 1.442695
        %v551 = vpow.pop %v550
        %v552 = vsel %vm473, %v551, 0.0
        %553 = vadd.xlane.f32.xlu0 %v552
        %v554 = vpop.xlane.xlu0 %553
        %v555 = vrcp.pop %v554
        %v556 = vmul.f32 %v551, %v555
        %557 = vrot.lane.b32.xlu0 %v434, 88
        %v558 = vpop.permute.xlu0 %557
        %559 = vrot.lane.b32.xlu0 %v437, 88
        %v560 = vpop.permute.xlu0 %559
        %v564 = vsel %vm473, %v556, 0
        %566 = vmatpush.msra.mxu0 0.0
        %567 = vmatpush.msra.mxu0 0.0
        %568 = vmatpush.msra.mxu0 0.0
        %569 = vmatpush.msra.mxu0 0.0
        %570 = vmatpush.msra.mxu0 0.0
        %571 = vmatpush.msra.mxu0 0.0
        %572 = vmatpush.msra.mxu0 0.0
        %573 = vmatpush.msra.mxu0 0.0
        %574 = vmatpush.msra.mxu0 0.0
        %575 = vmatpush.msra.mxu0 0.0
        %576 = vmatpush.msra.mxu0 0.0
        %577 = vmatpush.msra.mxu0 0.0
        %578 = vmatpush.msra.mxu0 0.0
        %579 = vmatpush.msra.mxu0 0.0
        %580 = vmatpush.msra.mxu0 %v560
        %581 = vmatpush.msra.mxu0 %v558
        %582 = vmatmul.f32.gmra.mxu0 %v564
        %v583 = vpop.f32.mrf.mxu0
        %v584 = vadd.f32 0.0, %v583
        %585 = vdwg.mxu0
        %587 = vrot.lane.b32.xlu0 %v584, 8
        %v588 = vpop.permute.xlu0 %587
        %vm590 = vcmask 130112
        %591 = vst.msk [vmem:[#allocation2] sm:$0xff] %vm590, %v588
        %592 = vrot.lane.b32.xlu0 %v434, 112
        %v593 = vpop.permute.xlu0 %592
        %594 = vrot.lane.b32.xlu0 %v437, 112
        %v595 = vpop.permute.xlu0 %594
        %v597 = vsel %vm443, %v441, 0
        %v599 = vsel %vm443, %v593, 0
        %v601 = vsel %vm443, %v595, 0
        %603 = vmatpush.xpose.msra.mxu0 0.0
        %604 = vmatpush.xpose.msra.mxu0 0.0
        %605 = vmatpush.xpose.msra.mxu0 0.0
        %606 = vmatpush.xpose.msra.mxu0 0.0
        %607 = vmatpush.xpose.msra.mxu0 0.0
        %608 = vmatpush.xpose.msra.mxu0 0.0
        %609 = vmatpush.xpose.msra.mxu0 0.0
        %610 = vmatpush.xpose.msra.mxu0 0.0
        %611 = vmatpush.xpose.msra.mxu0 0.0
        %612 = vmatpush.xpose.msra.mxu0 0.0
        %613 = vmatpush.xpose.msra.mxu0 0.0
        %614 = vmatpush.xpose.msra.mxu0 0.0
        %615 = vmatpush.xpose.msra.mxu0 0.0
        %616 = vmatpush.xpose.msra.mxu0 0.0
        %617 = vmatpush.xpose.msra.mxu0 %v601
        %618 = vmatpush.xpose.msra.mxu0 %v599
        %619 = vmatmul.f32.gmra.mxu0 %v597
        %v620 = vpop.f32.mrf.mxu0
        %v621 = vadd.f32 0.0, %v620
        %622 = vdwg.mxu0
        %v623 = vsel %vm473, %v621, -inf
        %624 = vmax.xlane.f32.xlu0 %v623
        %v625 = vpop.xlane.xlu0 %624
        %v626 = vsub.f32 %v621, %v625
        %v627 = vmul.f32 %v626, 1.442695
        %v628 = vpow.pop %v627
        %v629 = vsel %vm473, %v628, 0.0
        %630 = vadd.xlane.f32.xlu0 %v629
        %v631 = vpop.xlane.xlu0 %630
        %v632 = vrcp.pop %v631
        %v633 = vmul.f32 %v628, %v632
        %634 = vrot.lane.b32.xlu0 %v434, 80
        %v635 = vpop.permute.xlu0 %634
        %636 = vrot.lane.b32.xlu0 %v437, 80
        %v637 = vpop.permute.xlu0 %636
        %v641 = vsel %vm473, %v633, 0
        %643 = vmatpush.msra.mxu0 0.0
        %644 = vmatpush.msra.mxu0 0.0
        %645 = vmatpush.msra.mxu0 0.0
        %646 = vmatpush.msra.mxu0 0.0
        %647 = vmatpush.msra.mxu0 0.0
        %648 = vmatpush.msra.mxu0 0.0
        %649 = vmatpush.msra.mxu0 0.0
        %650 = vmatpush.msra.mxu0 0.0
        %651 = vmatpush.msra.mxu0 0.0
        %652 = vmatpush.msra.mxu0 0.0
        %653 = vmatpush.msra.mxu0 0.0
        %654 = vmatpush.msra.mxu0 0.0
        %655 = vmatpush.msra.mxu0 0.0
        %656 = vmatpush.msra.mxu0 0.0
        %657 = vmatpush.msra.mxu0 %v637
        %658 = vmatpush.msra.mxu0 %v635
        %659 = vmatmul.f32.gmra.mxu0 %v641
        %v660 = vpop.f32.mrf.mxu0
        %v661 = vadd.f32 0.0, %v660
        %662 = vdwg.mxu0
        %664 = vrot.lane.b32.xlu0 %v661, 16
        %v665 = vpop.permute.xlu0 %664
        %vm667 = vcmask 195712
        %668 = vst.msk [vmem:[#allocation2] sm:$0xff] %vm667, %v665
        %669 = vrot.lane.b32.xlu0 %v434, 104
        %v670 = vpop.permute.xlu0 %669
        %671 = vrot.lane.b32.xlu0 %v437, 104
        %v672 = vpop.permute.xlu0 %671
        %v674 = vsel %vm443, %v442, 0
        %v676 = vsel %vm443, %v670, 0
        %v678 = vsel %vm443, %v672, 0
        %680 = vmatpush.xpose.msra.mxu0 0.0
        %681 = vmatpush.xpose.msra.mxu0 0.0
        %682 = vmatpush.xpose.msra.mxu0 0.0
        %683 = vmatpush.xpose.msra.mxu0 0.0
        %684 = vmatpush.xpose.msra.mxu0 0.0
        %685 = vmatpush.xpose.msra.mxu0 0.0
        %686 = vmatpush.xpose.msra.mxu0 0.0
        %687 = vmatpush.xpose.msra.mxu0 0.0
        %688 = vmatpush.xpose.msra.mxu0 0.0
        %689 = vmatpush.xpose.msra.mxu0 0.0
        %690 = vmatpush.xpose.msra.mxu0 0.0
        %691 = vmatpush.xpose.msra.mxu0 0.0
        %692 = vmatpush.xpose.msra.mxu0 0.0
        %693 = vmatpush.xpose.msra.mxu0 0.0
        %694 = vmatpush.xpose.msra.mxu0 %v678
        %695 = vmatpush.xpose.msra.mxu0 %v676
        %696 = vmatmul.f32.gmra.mxu0 %v674
        %v697 = vpop.f32.mrf.mxu0
        %v698 = vadd.f32 0.0, %v697
        %699 = vdwg.mxu0
        %v700 = vsel %vm473, %v698, -inf
        %701 = vmax.xlane.f32.xlu0 %v700
        %v702 = vpop.xlane.xlu0 %701
        %v703 = vsub.f32 %v698, %v702
        %v704 = vmul.f32 %v703, 1.442695
        %v705 = vpow.pop %v704
        %v706 = vsel %vm473, %v705, 0.0
        %707 = vadd.xlane.f32.xlu0 %v706
        %v708 = vpop.xlane.xlu0 %707
        %v709 = vrcp.pop %v708
        %v710 = vmul.f32 %v705, %v709
        %711 = vrot.lane.b32.xlu0 %v434, 72
        %v712 = vpop.permute.xlu0 %711
        %713 = vrot.lane.b32.xlu0 %v437, 72
        %v714 = vpop.permute.xlu0 %713
        %v718 = vsel %vm473, %v710, 0
        %720 = vmatpush.msra.mxu0 0.0
        %721 = vmatpush.msra.mxu0 0.0
        %722 = vmatpush.msra.mxu0 0.0
        %723 = vmatpush.msra.mxu0 0.0
        %724 = vmatpush.msra.mxu0 0.0
        %725 = vmatpush.msra.mxu0 0.0
        %726 = vmatpush.msra.mxu0 0.0
        %727 = vmatpush.msra.mxu0 0.0
        %728 = vmatpush.msra.mxu0 0.0
        %729 = vmatpush.msra.mxu0 0.0
        %730 = vmatpush.msra.mxu0 0.0
        %731 = vmatpush.msra.mxu0 0.0
        %732 = vmatpush.msra.mxu0 0.0
        %733 = vmatpush.msra.mxu0 0.0
        %734 = vmatpush.msra.mxu0 %v714
        %735 = vmatpush.msra.mxu0 %v712
        %736 = vmatmul.f32.gmra.mxu0 %v718
        %v737 = vpop.f32.mrf.mxu0
        %v738 = vadd.f32 0.0, %v737
        %739 = vdwg.mxu0
        %741 = vrot.lane.b32.xlu0 %v738, 24
        %v742 = vpop.permute.xlu0 %741
        %vm744 = vcmask 261312
        %745 = vst.msk [vmem:[#allocation2] sm:$0xff] %vm744, %v742
        %746 = vst.msk [vmem:[%s398] sm:$0xff] %vm473, %v484
        %747 = vst.msk [vmem:[%s398 + $0x8] sm:$0xff] %vm473, %v556
        %748 = vst.msk [vmem:[%s398 + $0x10] sm:$0xff] %vm473, %v633
        %749 = vst.msk [vmem:[%s398 + $0x18] sm:$0xff] %vm473, %v710
        %v750 = vld [vmem:[#allocation2] sm:$0xff]
        %v751 = vld [vmem:[#allocation10] sm:$0xff]
        %v752 = vld [vmem:[#allocation10 + $0x8] sm:$0xff]
        %v753 = vld [vmem:[#allocation10 + $0x10] sm:$0xff]
        %v754 = vld [vmem:[#allocation10 + $0x18] sm:$0xff]
        %v755 = vld [vmem:[%s6] sm:$0x1]
        %v757 = vperm.slane %v755, 0
        %v760 = vsel %vm409, %v750, 0
        %762 = vmatpush.msra.mxu0 0.0
        %763 = vmatpush.msra.mxu0 0.0
        %764 = vmatpush.msra.mxu0 0.0
        %765 = vmatpush.msra.mxu0 0.0
        %766 = vmatpush.msra.mxu0 0.0
        %767 = vmatpush.msra.mxu0 0.0
        %768 = vmatpush.msra.mxu0 0.0
        %769 = vmatpush.msra.mxu0 0.0
        %770 = vmatpush.msra.mxu0 0.0
        %771 = vmatpush.msra.mxu0 0.0
        %772 = vmatpush.msra.mxu0 0.0
        %773 = vmatpush.msra.mxu0 0.0
        %774 = vmatpush.msra.mxu0 %v754
        %775 = vmatpush.msra.mxu0 %v753
        %776 = vmatpush.msra.mxu0 %v752
        %777 = vmatpush.msra.mxu0 %v751
        %778 = vmatmul.f32.gmra.mxu0 %v760
        %v779 = vpop.f32.mrf.mxu0
        %v780 = vadd.f32 %v757, %v779
        %781 = vdwg.mxu0
        %v782 = vld [vmem:[#allocation6] sm:$0xff]
        %v783 = vadd.f32 %v780, %v782
        %784 = vst.msk [vmem:[%s391] sm:$0xff] %vm409, %v783
        %s785 = sand.u32 %s189, 1
        %s786 = scalar_lea.sflag [#allocation5], %s785
        %s787 = sand.u32 %s189, 1
        %s788 = smul.addr %s787, 8
        %s789 = scalar_lea.vmem [#allocation12], %s788
        %s790 = sand.u32 %s215, 1
        %s791 = scalar_lea.sflag [#allocation14], %s790
        %s792 = sand.u32 %s215, 1
        %s793 = smul.addr %s792, 32
        %s794 = scalar_lea.vmem [#allocation13], %s793
        // Predicated region
        $region69: #{tpu_custom_call.1} parent=47 // pred_check
          %p795 = pneg %p199
        $region70: #{tpu_custom_call.1} parent=47 // pred_check_branch
          %797 = sbr.rel (%p795) target = $region72
        $region71: #{tpu_custom_call.1} parent=47 // pred_region
          %799 = vsyncadd %s786, 0
          %s800 = smul.addr %s29, 8
          %s801 = scalar_lea.hbm %s7, %s800
          %s803 = sshll.u32 %s789, 4
          %s804 = int_to_ptr.vmem [resolvable:$true] %s803
          %s805 = sshll.u32 %s801, 4
          %s806 = int_to_ptr.hbm [resolvable:$true] %s805
          %808 = dma.vmem_to_hbm [thread:$0]  %s804, 128, %s806, %s786
        $region72: #{tpu_custom_call.1} parent=47 // pred_fallthru
          _
        // Predicated region
        $region73: #{tpu_custom_call.1} parent=47 // pred_check
          %p809 = pneg %p225
        $region74: #{tpu_custom_call.1} parent=47 // pred_check_branch
          %811 = sbr.rel (%p809) target = $region76
        $region75: #{tpu_custom_call.1} parent=47 // pred_region
          %813 = vsyncadd %s791, 0
          %s814 = smul.addr %s29, 4
          %s815 = smul.addr %s814, 8
          %s816 = scalar_lea.hbm %s8, %s815
          %s817 = sshll.u32 %s794, 4
          %s818 = int_to_ptr.vmem [resolvable:$true] %s817
          %s819 = sshll.u32 %s816, 4
          %s820 = int_to_ptr.hbm [resolvable:$true] %s819
          %825 = dma.vmem_to_hbm [thread:$0]  %s818, 512, %s820, %s791, 128, 128, 8
        $region76: #{tpu_custom_call.1} parent=47 // pred_fallthru
          _
      $region48: #{tpu_custom_call.1} parent=5 // pred_fallthru
        _
      %p826 = scmp.le.s32.totalorder 2, %s24
      // Predicated region
      $region77: #{tpu_custom_call.1} parent=5 // pred_check
        %p827 = pneg %p826
      $region78: #{tpu_custom_call.1} parent=5 // pred_check_branch
        %829 = sbr.rel (%p827) target = $region80
      $region79: #{tpu_custom_call.1} parent=5 // pred_region
        %s830 = ssub.s32 %s24, 2
        // Predicated region
        $region81: #{tpu_custom_call.1} parent=79 // pred_check
          %p831 = pneg %p205
        $region82: #{tpu_custom_call.1} parent=79 // pred_check_branch
          %833 = sbr.rel (%p831) target = $region84
        $region83: #{tpu_custom_call.1} parent=79 // pred_region
          %s834 = sand.u32 %s190, 1
          %s835 = scalar_lea.sflag [#allocation5], %s834
          %s836 = sand.u32 %s190, 1
          %s837 = smul.addr %s836, 8
          %s838 = scalar_lea.vmem [#allocation12], %s837
          %840 = dma.done %s835, 128
        $region84: #{tpu_custom_call.1} parent=79 // pred_fallthru
          _
        // Predicated region
        $region85: #{tpu_custom_call.1} parent=79 // pred_check
          %p841 = pneg %p231
        $region86: #{tpu_custom_call.1} parent=79 // pred_check_branch
          %843 = sbr.rel (%p841) target = $region88
        $region87: #{tpu_custom_call.1} parent=79 // pred_region
          %s844 = sand.u32 %s216, 1
          %s845 = scalar_lea.sflag [#allocation14], %s844
          %s846 = sand.u32 %s216, 1
          %s847 = smul.addr %s846, 32
          %s848 = scalar_lea.vmem [#allocation13], %s847
          %850 = dma.done %s845, 512
        $region88: #{tpu_custom_call.1} parent=79 // pred_fallthru
          _
      $region80: #{tpu_custom_call.1} parent=5 // pred_fallthru
        _
    $region6: #{tpu_custom_call.1} parent=1 // loop_footer
      %s28 = sadd.s32 1, %s24
    $region7: #{tpu_custom_call.1} parent=1 // loop_footer_branch
      %23 = sbr.rel target = $region3
    $region8: #{tpu_custom_call.1} parent=1 // loop_exit
      _
    %851 = vsyncpa [#allocation4], 1
    %s852 = scalar_lea.sflag [#allocation4], 1
    %853 = vsyncpa %s852, 1
    %854 = vsyncpa [#allocation7], 1
    %855 = vsyncpa [#allocation11], 1
    %856 = vsyncpa [#allocation5], 1
    %s857 = scalar_lea.sflag [#allocation5], 1
    %858 = vsyncpa %s857, 1
    %859 = vsyncpa [#allocation14], 1
    %s860 = scalar_lea.sflag [#allocation14], 1
    %861 = vsyncpa %s860, 1

</llo_original>
